<compile_context>
chip_gen: v7x
topology: tpu7x:2x2x1
jax: 0.10.0
libtpu: 0.0.40
codegen_flags: <defaults>
</compile_context>

<pallas_src>
import functools

import jax
import jax.numpy as jnp
from jax.experimental import pallas as pl
from jax.experimental.pallas import tpu as pltpu

TILE_M_MAX = 4096            # row tile: I/O blocks are < 1 MiB even at 4096
MEGACORE_SPLIT_ROWS = 1024   # once M reaches this, keep >= 2 grid steps


def _round_up(n, m):
    return ((n + m - 1) // m) * m


def actor_critic_kernel(x_ref, w1_ref, b1_ref, w2_ref, b2_ref, wh_ref, bh_ref,
                        out_ref, *, action_size):
    # Shared trunk: two Linear + ReLU layers.  bf16 MXU operands, f32 accumulate.
    # x arrives f32; cast to bf16 here (VPU, free under DMA slack) so the
    # wrapper does not burn an extra HBM round trip on a standalone cast op.
    x = x_ref[...].astype(jnp.bfloat16)
    h1 = jnp.dot(x, w1_ref[...], preferred_element_type=jnp.float32) + b1_ref[...]
    h1 = jnp.maximum(h1, 0.0)
    h2 = jnp.dot(h1.astype(jnp.bfloat16), w2_ref[...],
                 preferred_element_type=jnp.float32) + b2_ref[...]
    h2 = jnp.maximum(h2, 0.0)

    # Fused actor+critic head (narrow slab):
    #   columns [0, A)           -> actor logits
    #   column  A                -> critic value
    #   columns (A, head_lanes)  -> zero padding
    heads = jnp.dot(h2.astype(jnp.bfloat16), wh_ref[...],
                    preferred_element_type=jnp.float32) + bh_ref[...]

    # (1, head_lanes) column mask, broadcast against (tile_m, head_lanes).
    col = jax.lax.broadcasted_iota(jnp.int32, (1, heads.shape[-1]), 1)
    actor_mask = col < action_size

    # Max-stabilized softmax over actor lanes only (value / pad lanes -> -inf so
    # exp() contributes exactly 0).  Exact division keeps row sums == 1.
    logits = jnp.where(actor_mask, heads, -jnp.inf)
    m = jnp.max(logits, axis=-1, keepdims=True)
    e = jnp.exp(logits - m)
    denom = jnp.sum(e, axis=-1, keepdims=True)
    probs = e / denom

    # Single narrow store: softmax probs in actor lanes, raw head output
    # (value + zero padding) everywhere else.  Output stays f32 so the critic
    # value loses no precision.
    out_ref[...] = jnp.where(actor_mask, probs, heads)


def actor_critic_forward(x, params):
    """x: (B, T, state_size) float32. Returns (actions (B,T,A), value (B,T,1))."""
    (w1, b1, w2, b2, wa, ba, wv, bv) = params
    B, T, S = x.shape
    H = w1.shape[1]
    A = wa.shape[1]

    # --- Fuse actor + critic heads into one narrow (H, head_lanes) weight ---
    head_lanes = _round_up(A + 1, 8)
    wh = jnp.zeros((H, head_lanes), jnp.float32)
    wh = wh.at[:, :A].set(wa).at[:, A:A + 1].set(wv)
    bh = jnp.zeros((1, head_lanes), jnp.float32)
    bh = bh.at[:, :A].set(ba).at[:, A:A + 1].set(bv)

    # --- Flatten rows, choose the row tile, pad M to a multiple of it ---
    M = B * T
    m8 = _round_up(M, 8)                       # sublane multiple
    if m8 >= MEGACORE_SPLIT_ROWS:
        # Big tiles (amortize ~0.35 us/step overhead) but keep >= 2 grid steps
        # so the row axis can shard across v7x's two TensorCores.
        tile_m = min(TILE_M_MAX, _round_up(pl.cdiv(m8, 2), 8))
    else:
        tile_m = m8
    m_pad = pl.cdiv(m8, tile_m) * tile_m

    x2d = x.reshape(M, S)
    if m_pad != M:
        x2d = jnp.pad(x2d, ((0, m_pad - M), (0, 0)))

    # Weights to bf16 once in the wrapper (tiny); x stays f32 and is cast
    # inside the kernel.  Biases / epilogue stay f32.
    w1_bf = w1.astype(jnp.bfloat16)
    w2_bf = w2.astype(jnp.bfloat16)
    wh_bf = wh.astype(jnp.bfloat16)

    grid = (m_pad // tile_m,)

    def const(shape):
        # Weight/bias blocks: constant block index -> VMEM-resident across steps.
        return pl.BlockSpec(shape, lambda i: (0, 0))

    cost = pl.CostEstimate(
        flops=2 * m_pad * (S * H + H * H + H * head_lanes),
        transcendentals=m_pad * head_lanes,
        bytes_accessed=(x2d.size * 4 + m_pad * head_lanes * 4
                        + (w1_bf.size + w2_bf.size + wh_bf.size) * 2
                        + (b1.size + b2.size + bh.size) * 4),
    )

    # TODO(synk): on v7x, sweep dimension_semantics=(pltpu.CORE_PARALLEL,) so the
    # row axis is explicitly split across both TensorCores; plain "parallel" is
    # kept here as the portable default.
    slab = pl.pallas_call(
        functools.partial(actor_critic_kernel, action_size=A),
        grid=grid,
        in_specs=[
            pl.BlockSpec((tile_m, S), lambda i: (i, 0)),        # x rows (tiled, f32)
            const((S, H)), const((1, H)),                       # layer1
            const((H, H)), const((1, H)),                       # layer2
            const((H, head_lanes)), const((1, head_lanes)),     # fused heads
        ],
        out_specs=pl.BlockSpec((tile_m, head_lanes), lambda i: (i, 0)),
        out_shape=jax.ShapeDtypeStruct((m_pad, head_lanes), jnp.float32),
        compiler_params=pltpu.CompilerParams(
            dimension_semantics=("parallel",),
            vmem_limit_bytes=32 * 1024 * 1024),
        cost_estimate=cost,
    )(x2d, w1_bf, b1, w2_bf, b2, wh_bf, bh)

    actions = slab[:M, :A].reshape(B, T, A)
    value = slab[:M, A:A + 1].reshape(B, T, 1)
    return actions, value


def actor_critic_reference(x, params):
    """Pure-JAX f32 reference of the torch forward (for validation)."""
    (w1, b1, w2, b2, wa, ba, wv, bv) = params
    h1 = jnp.maximum(x @ w1 + b1, 0.0)
    h2 = jnp.maximum(h1 @ w2 + b2, 0.0)
    actions = jax.nn.softmax(h2 @ wa + ba, axis=-1)
    value = h2 @ wv + bv
    return actions, value


def init_params(key, state_size, action_size, n_hidden=64):
    """Deterministic init mimicking torch.nn.Linear default (U[-1/sqrt(fan_in), +1/sqrt(fan_in)]).
    Weights stored transposed relative to torch ((in, out)) so the kernel does x @ W."""
    def linear(k, fan_in, fan_out):
        kw, kb = jax.random.split(k)
        bound = 1.0 / jnp.sqrt(jnp.float32(fan_in))
        w = jax.random.uniform(kw, (fan_in, fan_out), jnp.float32, -bound, bound)
        b = jax.random.uniform(kb, (1, fan_out), jnp.float32, -bound, bound)
        return w, b

    k1, k2, k3, k4 = jax.random.split(key, 4)
    w1, b1 = linear(k1, state_size, n_hidden)
    w2, b2 = linear(k2, n_hidden, n_hidden)
    wa, ba = linear(k3, n_hidden, action_size)
    wv, bv = linear(k4, n_hidden, 1)
    return (w1, b1, w2, b2, wa, ba, wv, bv)


def _check(x, params, B, T, A):
    actions, value = actor_critic_forward(x, params)
    jax.block_until_ready((actions, value))
    assert actions.shape == (B, T, A)
    assert value.shape == (B, T, 1)
    # Exact-division softmax: row sums hit 1 to f32 precision.
    assert bool(jnp.allclose(jnp.sum(actions, axis=-1), 1.0, atol=1e-3))
    ref_actions, ref_value = actor_critic_reference(x, params)
    assert bool(jnp.allclose(actions, ref_actions, atol=5e-2, rtol=5e-2))
    assert bool(jnp.allclose(value, ref_value, atol=5e-2, rtol=5e-2))


if __name__ == "__main__":
    # Small shapes consistent with the module: x is 3-D because softmax uses dim=2.
    B, T = 2, 8          # batch, rollout length
    STATE_SIZE = 16
    ACTION_SIZE = 4
    N_HIDDEN = 64

    key = jax.random.PRNGKey(0)
    kx, kp, kx2 = jax.random.split(key, 3)
    params = init_params(kp, STATE_SIZE, ACTION_SIZE, N_HIDDEN)

    # Primary small-shape run (single grid step).
    x = jax.random.normal(kx, (B, T, STATE_SIZE), dtype=jnp.float32)
    _check(x, params, B, T, ACTION_SIZE)

    # Second run with enough rows to exercise the multi-step (>= 2) row grid.
    B2, T2 = 4, 300
    x2 = jax.random.normal(kx2, (B2, T2, STATE_SIZE), dtype=jnp.float32)
    _check(x2, params, B2, T2, ACTION_SIZE)

    print("KERNEL_OK")
</pallas_src>

<mosaic_0001>
module attributes {stable_mosaic.version = 11 : i64} {
  func.func @actor_critic_kernel(%arg0: i32, %arg1: memref<16x16xf32, #tpu.memory_space<vmem>>, %arg2: memref<16x64xbf16, #tpu.memory_space<vmem>>, %arg3: memref<1x64xf32, #tpu.memory_space<vmem>>, %arg4: memref<64x64xbf16, #tpu.memory_space<vmem>>, %arg5: memref<1x64xf32, #tpu.memory_space<vmem>>, %arg6: memref<64x8xbf16, #tpu.memory_space<vmem>>, %arg7: memref<1x8xf32, #tpu.memory_space<vmem>>, %arg8: memref<16x8xf32, #tpu.memory_space<vmem>>) attributes {dimension_semantics = [#tpu.dimension_semantics<parallel>], iteration_bounds = array<i64: 1>, scalar_prefetch = 0 : i64, scratch_operands = 0 : i64, tpu.core_type = #tpu.core_type<tc>, window_params = [{transform_indices = @transform_0, window_bounds = array<i64: 16, 16>}, {pipeline_mode = #tpu.pipeline_mode<synchronous>, transform_indices = @transform_1, window_bounds = array<i64: 16, 64>}, {pipeline_mode = #tpu.pipeline_mode<synchronous>, transform_indices = @transform_2, window_bounds = array<i64: 1, 64>}, {pipeline_mode = #tpu.pipeline_mode<synchronous>, transform_indices = @transform_3, window_bounds = array<i64: 64, 64>}, {pipeline_mode = #tpu.pipeline_mode<synchronous>, transform_indices = @transform_4, window_bounds = array<i64: 1, 64>}, {pipeline_mode = #tpu.pipeline_mode<synchronous>, transform_indices = @transform_5, window_bounds = array<i64: 64, 8>}, {pipeline_mode = #tpu.pipeline_mode<synchronous>, transform_indices = @transform_6, window_bounds = array<i64: 1, 8>}, {transform_indices = @transform_7, window_bounds = array<i64: 16, 8>}]} {
    %c0 = arith.constant 0 : index
    %c0_0 = arith.constant 0 : index
    %0 = vector.load %arg1[%c0, %c0_0] : memref<16x16xf32, #tpu.memory_space<vmem>>, vector<16x16xf32>
    %1 = arith.truncf %0 : vector<16x16xf32> to vector<16x16xbf16>
    %c0_1 = arith.constant 0 : index
    %c0_2 = arith.constant 0 : index
    %2 = vector.load %arg2[%c0_1, %c0_2] : memref<16x64xbf16, #tpu.memory_space<vmem>>, vector<16x64xbf16>
    %cst = arith.constant dense<0.000000e+00> : vector<16x64xf32>
    %3 = tpu.matmul %1, %2, %cst {dimension_numbers = #tpu.dot_dimension_numbers<[1], [0], [0], [1], [0, 0, 1, 1], [], []>} : vector<16x16xbf16>, vector<16x64xbf16>, vector<16x64xf32> -> vector<16x64xf32>
    %c0_3 = arith.constant 0 : index
    %c0_4 = arith.constant 0 : index
    %4 = vector.load %arg3[%c0_3, %c0_4] : memref<1x64xf32, #tpu.memory_space<vmem>>, vector<1x64xf32>
    %5 = vector.broadcast %4 : vector<1x64xf32> to vector<16x64xf32>
    %6 = arith.addf %3, %5 : vector<16x64xf32>
    %cst_5 = arith.constant 0.000000e+00 : f32
    %7 = vector.broadcast %cst_5 : f32 to vector<16x64xf32>
    %8 = arith.maximumf %6, %7 : vector<16x64xf32>
    %9 = arith.truncf %8 : vector<16x64xf32> to vector<16x64xbf16>
    %c0_6 = arith.constant 0 : index
    %c0_7 = arith.constant 0 : index
    %10 = vector.load %arg4[%c0_6, %c0_7] : memref<64x64xbf16, #tpu.memory_space<vmem>>, vector<64x64xbf16>
    %cst_8 = arith.constant dense<0.000000e+00> : vector<16x64xf32>
    %11 = tpu.matmul %9, %10, %cst_8 {dimension_numbers = #tpu.dot_dimension_numbers<[1], [0], [0], [1], [0, 0, 1, 1], [], []>} : vector<16x64xbf16>, vector<64x64xbf16>, vector<16x64xf32> -> vector<16x64xf32>
    %c0_9 = arith.constant 0 : index
    %c0_10 = arith.constant 0 : index
    %12 = vector.load %arg5[%c0_9, %c0_10] : memref<1x64xf32, #tpu.memory_space<vmem>>, vector<1x64xf32>
    %13 = vector.broadcast %12 : vector<1x64xf32> to vector<16x64xf32>
    %14 = arith.addf %11, %13 : vector<16x64xf32>
    %cst_11 = arith.constant 0.000000e+00 : f32
    %15 = vector.broadcast %cst_11 : f32 to vector<16x64xf32>
    %16 = arith.maximumf %14, %15 : vector<16x64xf32>
    %17 = arith.truncf %16 : vector<16x64xf32> to vector<16x64xbf16>
    %c0_12 = arith.constant 0 : index
    %c0_13 = arith.constant 0 : index
    %18 = vector.load %arg6[%c0_12, %c0_13] : memref<64x8xbf16, #tpu.memory_space<vmem>>, vector<64x8xbf16>
    %cst_14 = arith.constant dense<0.000000e+00> : vector<16x8xf32>
    %19 = tpu.matmul %17, %18, %cst_14 {dimension_numbers = #tpu.dot_dimension_numbers<[1], [0], [0], [1], [0, 0, 1, 1], [], []>} : vector<16x64xbf16>, vector<64x8xbf16>, vector<16x8xf32> -> vector<16x8xf32>
    %c0_15 = arith.constant 0 : index
    %c0_16 = arith.constant 0 : index
    %20 = vector.load %arg7[%c0_15, %c0_16] : memref<1x8xf32, #tpu.memory_space<vmem>>, vector<1x8xf32>
    %21 = vector.broadcast %20 : vector<1x8xf32> to vector<16x8xf32>
    %22 = arith.addf %19, %21 : vector<16x8xf32>
    %23 = tpu.iota {dimensions = array<i32: 1>} : vector<1x8xi32>
    %c4_i32 = arith.constant 4 : i32
    %24 = vector.broadcast %c4_i32 : i32 to vector<1x8xi32>
    %25 = arith.cmpi slt, %23, %24 : vector<1x8xi32>
    %cst_17 = arith.constant 0xFF800000 : f32
    %26 = vector.shape_cast %25 : vector<1x8xi1> to vector<1x8xi1>
    %27 = vector.broadcast %26 : vector<1x8xi1> to vector<16x8xi1>
    %28 = vector.broadcast %cst_17 : f32 to vector<16x8xf32>
    %29 = arith.select %27, %22, %28 : vector<16x8xi1>, vector<16x8xf32>
    %cst_18 = arith.constant dense<0xFF800000> : vector<16xf32>
    %30 = vector.multi_reduction <maximumf>, %29, %cst_18 [1] : vector<16x8xf32> to vector<16xf32>
    %31 = vector.shape_cast %30 : vector<16xf32> to vector<16x1xf32>
    %32 = vector.broadcast %31 : vector<16x1xf32> to vector<16x8xf32>
    %33 = arith.subf %29, %32 : vector<16x8xf32>
    %34 = math.exp %33 : vector<16x8xf32>
    %cst_19 = arith.constant dense<0.000000e+00> : vector<16xf32>
    %35 = vector.multi_reduction <add>, %34, %cst_19 [1] : vector<16x8xf32> to vector<16xf32>
    %36 = vector.shape_cast %35 : vector<16xf32> to vector<16x1xf32>
    %37 = vector.broadcast %36 : vector<16x1xf32> to vector<16x8xf32>
    %38 = arith.divf %34, %37 : vector<16x8xf32>
    %39 = vector.shape_cast %25 : vector<1x8xi1> to vector<1x8xi1>
    %40 = vector.broadcast %39 : vector<1x8xi1> to vector<16x8xi1>
    %41 = arith.select %40, %38, %22 : vector<16x8xi1>, vector<16x8xf32>
    %c0_20 = arith.constant 0 : index
    %c0_21 = arith.constant 0 : index
    %42 = vector.load %arg8[%c0_20, %c0_21] : memref<16x8xf32, #tpu.memory_space<vmem>>, vector<16x8xf32>
    tpu.vector_store %arg8[%c0_20, %c0_21], %41 {strides = array<i32>} : memref<16x8xf32, #tpu.memory_space<vmem>>, vector<16x8xf32>,
    return
  }
  func.func @transform_0(%arg0: i32) -> (i32, i32) {
    %c0_i32 = arith.constant 0 : i32
    %c0_i32_0 = arith.constant 0 : i32
    return %arg0, %c0_i32 : i32, i32
  }
  func.func @transform_1(%arg0: i32) -> (i32, i32) {
    %c0_i32 = arith.constant 0 : i32
    %c0_i32_0 = arith.constant 0 : i32
    %c0_i32_1 = arith.constant 0 : i32
    return %c0_i32, %c0_i32_0 : i32, i32
  }
  func.func @transform_2(%arg0: i32) -> (i32, i32) {
    %c0_i32 = arith.constant 0 : i32
    %c0_i32_0 = arith.constant 0 : i32
    %c0_i32_1 = arith.constant 0 : i32
    return %c0_i32, %c0_i32_0 : i32, i32
  }
  func.func @transform_3(%arg0: i32) -> (i32, i32) {
    %c0_i32 = arith.constant 0 : i32
    %c0_i32_0 = arith.constant 0 : i32
    %c0_i32_1 = arith.constant 0 : i32
    return %c0_i32, %c0_i32_0 : i32, i32
  }
  func.func @transform_4(%arg0: i32) -> (i32, i32) {
    %c0_i32 = arith.constant 0 : i32
    %c0_i32_0 = arith.constant 0 : i32
    %c0_i32_1 = arith.constant 0 : i32
    return %c0_i32, %c0_i32_0 : i32, i32
  }
  func.func @transform_5(%arg0: i32) -> (i32, i32) {
    %c0_i32 = arith.constant 0 : i32
    %c0_i32_0 = arith.constant 0 : i32
    %c0_i32_1 = arith.constant 0 : i32
    return %c0_i32, %c0_i32_0 : i32, i32
  }
  func.func @transform_6(%arg0: i32) -> (i32, i32) {
    %c0_i32 = arith.constant 0 : i32
    %c0_i32_0 = arith.constant 0 : i32
    %c0_i32_1 = arith.constant 0 : i32
    return %c0_i32, %c0_i32_0 : i32, i32
  }
  func.func @transform_7(%arg0: i32) -> (i32, i32) {
    %c0_i32 = arith.constant 0 : i32
    %c0_i32_0 = arith.constant 0 : i32
    return %arg0, %c0_i32 : i32, i32
  }
}

</mosaic_0001>

<llo_original>
// kernel: tpu_custom_call.1
$region0: #{tpu_custom_call.1}
  #allocation0 [shape = 'u32[]', space=smem, size = 0x4, offset = 0x4, fixed_abs, tag = 'smem constant byte address 0x4 - core index']
  #allocation1 [shape = 'u32[144,128]{1,0:T(1,128)}', space=vmem, size = 0x12000, scoped, tag = 'internal scratch']
  %s0 = inlined_call_operand.hbm [shape: f32[16,16], index: 0, kind: input, shape index: {}]
  %s1 = inlined_call_operand.vmem [shape: bf16[16,64], index: 1, kind: input, shape index: {}]
  %s2 = inlined_call_operand.vmem [shape: f32[1,64], index: 2, kind: input, shape index: {}]
  %s3 = inlined_call_operand.vmem [shape: bf16[64,64], index: 3, kind: input, shape index: {}]
  %s4 = inlined_call_operand.vmem [shape: f32[1,64], index: 4, kind: input, shape index: {}]
  %s5 = inlined_call_operand.vmem [shape: bf16[64,8], index: 5, kind: input, shape index: {}]
  %s6 = inlined_call_operand.vmem [shape: f32[1,8], index: 6, kind: input, shape index: {}]
  %s7 = inlined_call_operand.vmem [shape: f32[16,8], index: 7, kind: output, shape index: {}]
  %s8 = sld [smem:[#allocation0]]
  $region42: #{tpu_custom_call.1} parent=0
    _
  %s10 = ssub.s32 1, %s8
  %s11 = scalar_select 0, %s10, %s8
  $region1: #{tpu_custom_call.1} parent=0
    #allocation2 [shape = 'u8[8192]{0}', space=vmem, size = 0x2000, scoped, tag = 'input window, operand 0, single buffered']
    #allocation3 [shape = 's32[1]{0}', space=sflag, size = 0x4, scoped, tag = 'scoped memory for tpu_custom_call.1']
    %12 = vsyncpa [#allocation3], 0
    // Predicated region
    $region2: #{tpu_custom_call.1} parent=1 // pred_check
      _
    $region3: #{tpu_custom_call.1} parent=1 // pred_check_branch
      %14 = sbr.rel (0) target = $region5
    $region4: #{tpu_custom_call.1} parent=1 // pred_region
      %s16 = ssub.s32 256, 256
      %17 = vsyncadd [#allocation3], %s16
      %s18 = sshll.u32 [#allocation2], 4
      %s19 = int_to_ptr.vmem [resolvable:$true] %s18
      %24 = dma.hbm_to_vmem [thread:$0]  %s0, 256, %s19, [#allocation3], 128, 128, 8
    $region5: #{tpu_custom_call.1} parent=1 // pred_fallthru
      _
    // Predicated region
    $region6: #{tpu_custom_call.1} parent=1 // pred_check
      _
    $region7: #{tpu_custom_call.1} parent=1 // pred_check_branch
      %26 = sbr.rel (0) target = $region9
    $region8: #{tpu_custom_call.1} parent=1 // pred_region
      _
    $region9: #{tpu_custom_call.1} parent=1 // pred_fallthru
      _
    // Predicated region
    $region10: #{tpu_custom_call.1} parent=1 // pred_check
      _
    $region11: #{tpu_custom_call.1} parent=1 // pred_check_branch
      %28 = sbr.rel (0) target = $region13
    $region12: #{tpu_custom_call.1} parent=1 // pred_region
      _
    $region13: #{tpu_custom_call.1} parent=1 // pred_fallthru
      _
    // Predicated region
    $region14: #{tpu_custom_call.1} parent=1 // pred_check
      _
    $region15: #{tpu_custom_call.1} parent=1 // pred_check_branch
      %30 = sbr.rel (0) target = $region17
    $region16: #{tpu_custom_call.1} parent=1 // pred_region
      _
    $region17: #{tpu_custom_call.1} parent=1 // pred_fallthru
      _
    // Predicated region
    $region18: #{tpu_custom_call.1} parent=1 // pred_check
      _
    $region19: #{tpu_custom_call.1} parent=1 // pred_check_branch
      %32 = sbr.rel (0) target = $region21
    $region20: #{tpu_custom_call.1} parent=1 // pred_region
      _
    $region21: #{tpu_custom_call.1} parent=1 // pred_fallthru
      _
    // Predicated region
    $region22: #{tpu_custom_call.1} parent=1 // pred_check
      _
    $region23: #{tpu_custom_call.1} parent=1 // pred_check_branch
      %34 = sbr.rel (0) target = $region25
    $region24: #{tpu_custom_call.1} parent=1 // pred_region
      _
    $region25: #{tpu_custom_call.1} parent=1 // pred_fallthru
      _
    // Predicated region
    $region26: #{tpu_custom_call.1} parent=1 // pred_check
      _
    $region27: #{tpu_custom_call.1} parent=1 // pred_check_branch
      %36 = sbr.rel (0) target = $region29
    $region28: #{tpu_custom_call.1} parent=1 // pred_region
      _
    $region29: #{tpu_custom_call.1} parent=1 // pred_fallthru
      _
    // Predicated region
    $region30: #{tpu_custom_call.1} parent=1 // pred_check
      _
    $region31: #{tpu_custom_call.1} parent=1 // pred_check_branch
      %38 = sbr.rel (0) target = $region33
    $region32: #{tpu_custom_call.1} parent=1 // pred_region
      %39 = dma.done [#allocation3], 256
    $region33: #{tpu_custom_call.1} parent=1 // pred_fallthru
      _
    %v41 = vld [vmem:[#allocation2] sm:$0xff]
    %v42 = vld [vmem:[#allocation2 + $0x8] sm:$0xff]
    %v43 = vpack.c.bf16 %v42, %v41
    %v44 = vld [vmem:[%s1] sm:$0xf]
    %v45 = vld [vmem:[%s1 + $0x4] sm:$0xf]
    %v46 = vld [vmem:[%s2] sm:$0x1]
    %v48 = vlaneseq
    %v49 = vshrl.u32 %v48, 7
    %v50 = vsub.s32 0, %v49
    %v51 = vrot.slane %v46, %v50
    %v55 = vunpack.c.l.b16 %v44
    %v56 = vunpack.c.l.b16 %v45
    %v57 = vpack.c.b16 %v56, %v55
    %vm59 = vcmask 130048
    %v61 = vsel %vm59, %v43, 0
    %63 = vmatprep.subr.bf16.mxu0 0
    %64 = vmatpush1.bf16.msra.mxu0 %v57
    %65 = vmatprep.subr.bf16.mxu0 0
    %66 = vmatpush1.bf16.msra.mxu0 0
    %67 = vmatprep.subr.bf16.mxu0 0
    %68 = vmatpush1.bf16.msra.mxu0 0
    %69 = vmatprep.subr.bf16.mxu0 0
    %70 = vmatpush1.bf16.msra.mxu0 0
    %71 = vmatprep.subr.bf16.mxu0 0
    %72 = vmatpush1.bf16.msra.mxu0 0
    %73 = vmatprep.subr.bf16.mxu0 0
    %74 = vmatpush1.bf16.msra.mxu0 0
    %75 = vmatprep.subr.bf16.mxu0 0
    %76 = vmatpush1.bf16.msra.mxu0 0
    %77 = vmatprep.subr.bf16.mxu0 0
    %78 = vmatpush1.bf16.msra.mxu0 0
    %79 = vmatprep.subr.bf16.mxu0 0
    %80 = vmatpush1.bf16.msra.mxu0 0
    %81 = vmatprep.subr.bf16.mxu0 0
    %82 = vmatpush1.bf16.msra.mxu0 0
    %83 = vmatprep.subr.bf16.mxu0 0
    %84 = vmatpush1.bf16.msra.mxu0 0
    %85 = vmatprep.subr.bf16.mxu0 0
    %86 = vmatpush1.bf16.msra.mxu0 0
    %87 = vmatprep.subr.bf16.mxu0 0
    %88 = vmatpush1.bf16.msra.mxu0 0
    %89 = vmatprep.subr.bf16.mxu0 0
    %90 = vmatpush1.bf16.msra.mxu0 0
    %91 = vmatprep.subr.bf16.mxu0 0
    %92 = vmatpush1.bf16.msra.mxu0 0
    %93 = vmatprep.subr.bf16.mxu0 0
    %94 = vmatpush1.bf16.msra.mxu0 0
    %95 = vmatprep.mubr.bf16.mxu0 0
    %96 = vmatmul.mubr.bf16.gmra.mrb[0].mxu0 %v61
    %v97 = vpop.f32.mrb[0].mxu0
    %v98 = vadd.f32 %v51, %v97
    %v99 = vpop.f32.mrb[0].mxu0
    %v100 = vpop.f32.mrb[0].mxu0
    %v101 = vadd.f32 %v51, %v100
    %v102 = vpop.f32.mrb[0].mxu0
    %103 = vdwg.mxu0
    %v104 = vmax.f32 %v98, 0.0
    %v105 = vmax.f32 %v101, 0.0
    %v106 = vpack.c.bf16 %v105, %v104
    %v107 = vld [vmem:[%s3] sm:$0xf]
    %v108 = vld [vmem:[%s3 + $0x4] sm:$0xf]
    %v109 = vld [vmem:[%s3 + $0x8] sm:$0xf]
    %v110 = vld [vmem:[%s3 + $0xc] sm:$0xf]
    %v111 = vld [vmem:[%s3 + $0x10] sm:$0xf]
    %v112 = vld [vmem:[%s3 + $0x14] sm:$0xf]
    %v113 = vld [vmem:[%s3 + $0x18] sm:$0xf]
    %v114 = vld [vmem:[%s3 + $0x1c] sm:$0xf]
    %v115 = vld [vmem:[%s4] sm:$0x1]
    %v117 = vlaneseq
    %v118 = vshrl.u32 %v117, 7
    %v119 = vsub.s32 0, %v118
    %v120 = vrot.slane %v115, %v119
    %v130 = vunpack.c.l.b16 %v107
    %v131 = vunpack.c.l.b16 %v108
    %v132 = vunpack.c.l.b16 %v109
    %v133 = vunpack.c.l.b16 %v110
    %v134 = vunpack.c.l.b16 %v111
    %v135 = vunpack.c.l.b16 %v112
    %v136 = vunpack.c.l.b16 %v113
    %v137 = vunpack.c.l.b16 %v114
    %v138 = vpack.c.b16 %v131, %v130
    %v139 = vpack.c.b16 %v133, %v132
    %v140 = vpack.c.b16 %v135, %v134
    %v141 = vpack.c.b16 %v137, %v136
    %vm146 = vcmask 523264
    %v148 = vsel %vm146, %v106, 0
    %150 = vmatprep.subr.bf16.mxu0 0
    %151 = vmatpush1.bf16.msra.mxu0 %v138
    %152 = vmatprep.subr.bf16.mxu0 0
    %153 = vmatpush1.bf16.msra.mxu0 %v139
    %154 = vmatprep.subr.bf16.mxu0 0
    %155 = vmatpush1.bf16.msra.mxu0 %v140
    %156 = vmatprep.subr.bf16.mxu0 0
    %157 = vmatpush1.bf16.msra.mxu0 %v141
    %158 = vmatprep.subr.bf16.mxu0 0
    %159 = vmatpush1.bf16.msra.mxu0 0
    %160 = vmatprep.subr.bf16.mxu0 0
    %161 = vmatpush1.bf16.msra.mxu0 0
    %162 = vmatprep.subr.bf16.mxu0 0
    %163 = vmatpush1.bf16.msra.mxu0 0
    %164 = vmatprep.subr.bf16.mxu0 0
    %165 = vmatpush1.bf16.msra.mxu0 0
    %166 = vmatprep.subr.bf16.mxu0 0
    %167 = vmatpush1.bf16.msra.mxu0 0
    %168 = vmatprep.subr.bf16.mxu0 0
    %169 = vmatpush1.bf16.msra.mxu0 0
    %170 = vmatprep.subr.bf16.mxu0 0
    %171 = vmatpush1.bf16.msra.mxu0 0
    %172 = vmatprep.subr.bf16.mxu0 0
    %173 = vmatpush1.bf16.msra.mxu0 0
    %174 = vmatprep.subr.bf16.mxu0 0
    %175 = vmatpush1.bf16.msra.mxu0 0
    %176 = vmatprep.subr.bf16.mxu0 0
    %177 = vmatpush1.bf16.msra.mxu0 0
    %178 = vmatprep.subr.bf16.mxu0 0
    %179 = vmatpush1.bf16.msra.mxu0 0
    %180 = vmatprep.subr.bf16.mxu0 0
    %181 = vmatpush1.bf16.msra.mxu0 0
    %182 = vmatprep.mubr.bf16.mxu0 0
    %183 = vmatmul.mubr.bf16.gmra.mrb[0].mxu0 %v148
    %v184 = vpop.f32.mrb[0].mxu0
    %v185 = vadd.f32 %v120, %v184
    %v186 = vpop.f32.mrb[0].mxu0
    %v187 = vpop.f32.mrb[0].mxu0
    %v188 = vadd.f32 %v120, %v187
    %v189 = vpop.f32.mrb[0].mxu0
    %190 = vdwg.mxu0
    %v191 = vmax.f32 %v185, 0.0
    %v192 = vmax.f32 %v188, 0.0
    %v193 = vpack.c.bf16 %v192, %v191
    %v194 = vld [vmem:[%s5] sm:$0xf]
    %v195 = vld [vmem:[%s5 + $0x4] sm:$0xf]
    %v196 = vld [vmem:[%s5 + $0x8] sm:$0xf]
    %v197 = vld [vmem:[%s5 + $0xc] sm:$0xf]
    %v198 = vld [vmem:[%s5 + $0x10] sm:$0xf]
    %v199 = vld [vmem:[%s5 + $0x14] sm:$0xf]
    %v200 = vld [vmem:[%s5 + $0x18] sm:$0xf]
    %v201 = vld [vmem:[%s5 + $0x1c] sm:$0xf]
    %v202 = vld [vmem:[%s6] sm:$0x1]
    %v204 = vlaneseq
    %v205 = vshrl.u32 %v204, 7
    %v206 = vsub.s32 0, %v205
    %v207 = vrot.slane %v202, %v206
    %v217 = vunpack.c.l.b16 %v194
    %v218 = vunpack.c.l.b16 %v195
    %v219 = vunpack.c.l.b16 %v196
    %v220 = vunpack.c.l.b16 %v197
    %v221 = vunpack.c.l.b16 %v198
    %v222 = vunpack.c.l.b16 %v199
    %v223 = vunpack.c.l.b16 %v200
    %v224 = vunpack.c.l.b16 %v201
    %v225 = vpack.c.b16 %v218, %v217
    %v226 = vpack.c.b16 %v220, %v219
    %v227 = vpack.c.b16 %v222, %v221
    %v228 = vpack.c.b16 %v224, %v223
    %v234 = vsel %vm146, %v193, 0
    %236 = vmatprep.subr.bf16.mxu0 0
    %237 = vmatpush1.bf16.msra.mxu0 %v225
    %238 = vmatprep.subr.bf16.mxu0 0
    %239 = vmatpush1.bf16.msra.mxu0 %v226
    %240 = vmatprep.subr.bf16.mxu0 0
    %241 = vmatpush1.bf16.msra.mxu0 %v227
    %242 = vmatprep.subr.bf16.mxu0 0
    %243 = vmatpush1.bf16.msra.mxu0 %v228
    %244 = vmatprep.subr.bf16.mxu0 0
    %245 = vmatpush1.bf16.msra.mxu0 0
    %246 = vmatprep.subr.bf16.mxu0 0
    %247 = vmatpush1.bf16.msra.mxu0 0
    %248 = vmatprep.subr.bf16.mxu0 0
    %249 = vmatpush1.bf16.msra.mxu0 0
    %250 = vmatprep.subr.bf16.mxu0 0
    %251 = vmatpush1.bf16.msra.mxu0 0
    %252 = vmatprep.subr.bf16.mxu0 0
    %253 = vmatpush1.bf16.msra.mxu0 0
    %254 = vmatprep.subr.bf16.mxu0 0
    %255 = vmatpush1.bf16.msra.mxu0 0
    %256 = vmatprep.subr.bf16.mxu0 0
    %257 = vmatpush1.bf16.msra.mxu0 0
    %258 = vmatprep.subr.bf16.mxu0 0
    %259 = vmatpush1.bf16.msra.mxu0 0
    %260 = vmatprep.subr.bf16.mxu0 0
    %261 = vmatpush1.bf16.msra.mxu0 0
    %262 = vmatprep.subr.bf16.mxu0 0
    %263 = vmatpush1.bf16.msra.mxu0 0
    %264 = vmatprep.subr.bf16.mxu0 0
    %265 = vmatpush1.bf16.msra.mxu0 0
    %266 = vmatprep.subr.bf16.mxu0 0
    %267 = vmatpush1.bf16.msra.mxu0 0
    %268 = vmatprep.mubr.bf16.mxu0 0
    %269 = vmatmul.mubr.bf16.gmra.mrb[0].mxu0 %v234
    %v270 = vpop.f32.mrb[0].mxu0
    %v271 = vadd.f32 %v207, %v270
    %v272 = vpop.f32.mrb[0].mxu0
    %v273 = vpop.f32.mrb[0].mxu0
    %v274 = vadd.f32 %v207, %v273
    %v275 = vpop.f32.mrb[0].mxu0
    %276 = vdwg.mxu0
    %v277 = vlaneseq
    %v278 = vand.u32 %v277, 127
    %vm279 = vcmp.lt.s32.totalorder %v278, 4
    %v280 = vsel %vm279, 1, 0
    %vm281 = vcmp.eq.s32.totalorder %v280, 1
    %v282 = vsel %vm281, %v271, -inf
    %v283 = vsel %vm281, %v274, -inf
    %vm284 = vcmask 64512
    %v285 = vsel %vm284, %v282, -inf
    %286 = vmax.xlane.f32.xlu0 %v285
    %v287 = vpop.xlane.xlu0 %286
    %v288 = vsel %vm284, %v283, -inf
    %289 = vmax.xlane.f32.xlu0 %v288
    %v290 = vpop.xlane.xlu0 %289
    %v291 = vsub.f32 %v282, %v287
    %v292 = vsub.f32 %v283, %v290
    %v293 = vmul.f32 %v291, 1.442695
    %v294 = vpow.pop %v293
    %v295 = vmul.f32 %v292, 1.442695
    %v296 = vpow.pop %v295
    %v297 = vsel %vm284, %v294, 0.0
    %298 = vadd.xlane.f32.xlu0 %v297
    %v299 = vpop.xlane.xlu0 %298
    %v300 = vsel %vm284, %v296, 0.0
    %301 = vadd.xlane.f32.xlu0 %v300
    %v302 = vpop.xlane.xlu0 %301
    %v303 = vrcp.pop %v299
    %v304 = vmul.f32 %v294, %v303
    %v305 = vrcp.pop %v302
    %v306 = vmul.f32 %v296, %v305
    %v307 = vsel %vm281, %v304, %v271
    %v308 = vsel %vm281, %v306, %v274
    %309 = vst.msk [vmem:[%s7] sm:$0xff] %vm284, %v307
    %310 = vst.msk [vmem:[%s7 + $0x8] sm:$0xff] %vm284, %v308
    // Predicated region
    $region34: #{tpu_custom_call.1} parent=1 // pred_check
      _
    $region35: #{tpu_custom_call.1} parent=1 // pred_check_branch
      %312 = sbr.rel (0) target = $region37
    $region36: #{tpu_custom_call.1} parent=1 // pred_region
      _
    $region37: #{tpu_custom_call.1} parent=1 // pred_fallthru
      _
    // Predicated region
    $region38: #{tpu_custom_call.1} parent=1 // pred_check
      _
    $region39: #{tpu_custom_call.1} parent=1 // pred_check_branch
      %314 = sbr.rel (0) target = $region41
    $region40: #{tpu_custom_call.1} parent=1 // pred_region
      _
    $region41: #{tpu_custom_call.1} parent=1 // pred_fallthru
      _
    %315 = vsyncpa [#allocation3], 1

</llo_original>
